<compile_context>
chip_gen: v7x
topology: tpu7x:2x2x1
jax: 0.10.0
libtpu: 0.0.40
codegen_flags: <defaults>
</compile_context>

<pallas_src>
import jax
import jax.numpy as jnp
from jax.experimental import pallas as pl
from jax.experimental.pallas import tpu as pltpu

LANE = 128     # vreg lane width
SUBLANE = 8    # vreg sublane count (f32)


def _round_up(n, m):
    return ((n + m - 1) // m) * m


def _sigmoid_f32(x):
    # tanh identity: sigmoid(x) = 0.5 * tanh(0.5*x) + 0.5
    # -> one EUP push per element; mul/add go to the VALU slot (has slack).
    return 0.5 * jnp.tanh(0.5 * x) + 0.5


def mlp_kernel(x_ref,
               w1_ref, b1_ref,
               w2_ref, b2_ref,
               w3_ref, b3_ref,
               w4_ref, b4_ref,
               o_ref):
    cdt = w1_ref.dtype                      # MXU compute dtype (bf16 default)
    x = x_ref[...].astype(cdt)              # cast in-register, no wrapper pass

    # layer 1: Linear + ReLU (f32 accumulate, f32 bias)
    h = jnp.dot(x, w1_ref[...], preferred_element_type=jnp.float32) + b1_ref[...]
    h = jnp.maximum(h, 0.0).astype(cdt)

    # layer 2: Linear + Sigmoid
    h = jnp.dot(h, w2_ref[...], preferred_element_type=jnp.float32) + b2_ref[...]
    h = _sigmoid_f32(h).astype(cdt)

    # layer 3: Linear + Sigmoid
    h = jnp.dot(h, w3_ref[...], preferred_element_type=jnp.float32) + b3_ref[...]
    h = _sigmoid_f32(h).astype(cdt)

    # layer 4: Linear + Sigmoid
    y = jnp.dot(h, w4_ref[...], preferred_element_type=jnp.float32) + b4_ref[...]
    o_ref[...] = _sigmoid_f32(y).astype(o_ref.dtype)


def _pick_tile_b(B, device_kind=None):
    """Per-generation batch tile. v5e: <=256 (vst/spill pressure).
    v7x: make sure the 'parallel' batch axis has >=2 steps for its 2 TCs.
    Generally: a few grid steps for DMA/compute overlap when B allows."""
    if device_kind is None:
        try:
            device_kind = jax.devices()[0].device_kind
        except Exception:
            device_kind = ""
    kind = str(device_kind).lower()

    cap = 256 if "v5" in kind else 512
    tile = min(cap, _round_up(B, SUBLANE))
    if "v7" in kind and B > SUBLANE:
        # 2 TensorCores: need at least 2 grid steps to shard the batch axis.
        tile = min(tile, _round_up(pl.cdiv(B, 2), SUBLANE))
    if B >= 4 * SUBLANE:
        # Prefer >=4 grid steps for pipelining, but never below half the cap.
        tile = min(tile, max(cap // 2, _round_up(pl.cdiv(B, 4), SUBLANE)))
    return max(SUBLANE, tile)


def neural_network7(x, params, *, compute_dtype=jnp.bfloat16, tile_b=None,
                    vmem_limit_bytes=None, single_buffer_weights=None):
    """Fused forward pass of NeuralNetwork7.

    x: (B, input_dim) float32
    params: w1..w4 stored as (in_dim, out_dim), b1..b4 as (1, out_dim) / (out_dim,)
    compute_dtype: MXU input dtype (bf16 default; accumulation is always f32)
    tile_b: batch rows per grid step; None -> per-generation heuristic
    vmem_limit_bytes: raise the scoped VMEM limit when scaling hidden dims
        (defaults: 16 MiB v5e / 32 MiB v6e,v7x — well below physical)
    single_buffer_weights: None -> auto (single-buffer resident weights only
        when they are big enough for double-buffering to matter)
    """
    w1, b1 = params["w1"], params["b1"]
    w2, b2 = params["w2"], params["b2"]
    w3, b3 = params["w3"], params["b3"]
    w4, b4 = params["w4"], params["b4"]

    B, d_in = x.shape
    hid = w1.shape[1]
    d_out = w4.shape[1]

    # ---- batch tiling (only the batch axis is ever padded) ----
    if tile_b is None:
        tile_b = _pick_tile_b(B)
    tile_b = max(SUBLANE, _round_up(min(tile_b, _round_up(B, SUBLANE)), SUBLANE))
    b_p = _round_up(B, tile_b)
    n_tiles = b_p // tile_b

    x_in = x if b_p == B else jnp.pad(x, ((0, b_p - B), (0, 0)))

    # ---- one-time tiny casts (no padding of feature/hidden/output dims) ----
    w1_c = w1.astype(compute_dtype)
    w2_c = w2.astype(compute_dtype)
    w3_c = w3.astype(compute_dtype)
    w4_c = w4.astype(compute_dtype)
    b1_c = b1.reshape(1, -1).astype(jnp.float32)
    b2_c = b2.reshape(1, -1).astype(jnp.float32)
    b3_c = b3.reshape(1, -1).astype(jnp.float32)
    b4_c = b4.reshape(1, -1).astype(jnp.float32)

    # ---- resident weights: single-buffer only when it actually matters ----
    w_bytes = (d_in * hid + 2 * hid * hid + hid * d_out) * jnp.dtype(compute_dtype).itemsize
    if single_buffer_weights is None:
        single_buffer_weights = (2 * w_bytes) > (8 << 20)   # >8 MiB doubled

    def whole(shape):
        # Same block every grid step -> no re-DMA across the batch grid.
        if single_buffer_weights:
            return pl.BlockSpec(shape, lambda i: (0, 0),
                                pipeline_mode=pl.Buffered(1))
        return pl.BlockSpec(shape, lambda i: (0, 0))

    # ---- advisory cost for XLA's scheduler around the custom call ----
    flops = 2 * b_p * (d_in * hid + hid * hid + hid * hid + hid * d_out)
    transcendentals = b_p * (hid + hid + d_out)     # one tanh per sigmoid elem
    bytes_accessed = (b_p * d_in * 4 + b_p * d_out * 4 + w_bytes
                      + (2 * hid + hid + d_out) * 4)

    out_p = pl.pallas_call(
        mlp_kernel,
        out_shape=jax.ShapeDtypeStruct((b_p, d_out), jnp.float32),
        grid_spec=pl.GridSpec(
            grid=(n_tiles,),
            in_specs=[
                pl.BlockSpec((tile_b, d_in), lambda i: (i, 0)),
                whole((d_in, hid)), whole((1, hid)),
                whole((hid, hid)), whole((1, hid)),
                whole((hid, hid)), whole((1, hid)),
                whole((hid, d_out)), whole((1, d_out)),
            ],
            out_specs=pl.BlockSpec((tile_b, d_out), lambda i: (i, 0)),
        ),
        compiler_params=pltpu.CompilerParams(
            dimension_semantics=("parallel",),
            vmem_limit_bytes=vmem_limit_bytes,
        ),
        cost_estimate=pl.CostEstimate(
            flops=flops,
            transcendentals=transcendentals,
            bytes_accessed=bytes_accessed,
        ),
    )(x_in, w1_c, b1_c, w2_c, b2_c, w3_c, b3_c, w4_c, b4_c)

    return out_p if b_p == B else out_p[:B]


def init_linear(key, in_dim, out_dim):
    """Mimic torch.nn.Linear default init: U(-1/sqrt(in), 1/sqrt(in))."""
    kw, kb = jax.random.split(key)
    bound = 1.0 / jnp.sqrt(jnp.float32(in_dim))
    # Stored as (in_dim, out_dim) so the kernel does x @ W + b.
    w = jax.random.uniform(kw, (in_dim, out_dim), jnp.float32, -bound, bound)
    b = jax.random.uniform(kb, (1, out_dim), jnp.float32, -bound, bound)
    return w, b


def reference_forward_f32(x, params):
    h = jnp.maximum(x @ params["w1"] + params["b1"], 0.0)
    h = jax.nn.sigmoid(h @ params["w2"] + params["b2"])
    h = jax.nn.sigmoid(h @ params["w3"] + params["b3"])
    return jax.nn.sigmoid(h @ params["w4"] + params["b4"])


def reference_forward_matched(x, params, compute_dtype=jnp.bfloat16):
    """Reference with the same mixed precision as the kernel:
    bf16 MXU inputs, f32 accumulation, f32 bias add and activations."""
    def dot(a, w):
        return jnp.dot(a.astype(compute_dtype), w.astype(compute_dtype),
                       preferred_element_type=jnp.float32)
    h = jnp.maximum(dot(x, params["w1"]) + params["b1"], 0.0)
    h = jax.nn.sigmoid(dot(h, params["w2"]) + params["b2"])
    h = jax.nn.sigmoid(dot(h, params["w3"]) + params["b3"])
    return jax.nn.sigmoid(dot(h, params["w4"]) + params["b4"])


if __name__ == "__main__":
    input_dim, hidden_dim, output_dim = 16, 32, 8
    batch = 8

    key = jax.random.PRNGKey(0)
    k_x, k1, k2, k3, k4 = jax.random.split(key, 5)

    x = jax.random.normal(k_x, (batch, input_dim), jnp.float32)

    w1, b1 = init_linear(k1, input_dim, hidden_dim)
    w2, b2 = init_linear(k2, hidden_dim, hidden_dim)
    w3, b3 = init_linear(k3, hidden_dim, hidden_dim)
    w4, b4 = init_linear(k4, hidden_dim, output_dim)
    params = dict(w1=w1, b1=b1, w2=w2, b2=b2, w3=w3, b3=b3, w4=w4, b4=b4)

    out = neural_network7(x, params)
    out = jax.block_until_ready(out)
    assert out.shape == (batch, output_dim)

    # Against a precision-matched reference (bf16 MXU inputs, f32 accumulate);
    # slack covers the EUP tanh approximation inside the sigmoid.
    ref_matched = reference_forward_matched(x, params)
    assert jnp.allclose(out, ref_matched, atol=5e-3, rtol=0), \
        "mismatch vs precision-matched reference"

    # Sanity check against the full-f32 reference (bf16 quantization slack).
    ref_f32 = reference_forward_f32(x, params)
    assert jnp.allclose(out, ref_f32, atol=5e-2, rtol=0), \
        "mismatch vs f32 reference"

    print("KERNEL_OK")
</pallas_src>

<mosaic_0001>
module attributes {stable_mosaic.version = 11 : i64} {
  func.func @mlp_kernel(%arg0: i32, %arg1: memref<8x16xf32, #tpu.memory_space<vmem>>, %arg2: memref<16x32xbf16, #tpu.memory_space<vmem>>, %arg3: memref<1x32xf32, #tpu.memory_space<vmem>>, %arg4: memref<32x32xbf16, #tpu.memory_space<vmem>>, %arg5: memref<1x32xf32, #tpu.memory_space<vmem>>, %arg6: memref<32x32xbf16, #tpu.memory_space<vmem>>, %arg7: memref<1x32xf32, #tpu.memory_space<vmem>>, %arg8: memref<32x8xbf16, #tpu.memory_space<vmem>>, %arg9: memref<1x8xf32, #tpu.memory_space<vmem>>, %arg10: memref<8x8xf32, #tpu.memory_space<vmem>>) attributes {dimension_semantics = [#tpu.dimension_semantics<parallel>], iteration_bounds = array<i64: 1>, scalar_prefetch = 0 : i64, scratch_operands = 0 : i64, tpu.core_type = #tpu.core_type<tc>, window_params = [{transform_indices = @transform_0, window_bounds = array<i64: 8, 16>}, {pipeline_mode = #tpu.pipeline_mode<synchronous>, transform_indices = @transform_1, window_bounds = array<i64: 16, 32>}, {pipeline_mode = #tpu.pipeline_mode<synchronous>, transform_indices = @transform_2, window_bounds = array<i64: 1, 32>}, {pipeline_mode = #tpu.pipeline_mode<synchronous>, transform_indices = @transform_3, window_bounds = array<i64: 32, 32>}, {pipeline_mode = #tpu.pipeline_mode<synchronous>, transform_indices = @transform_4, window_bounds = array<i64: 1, 32>}, {pipeline_mode = #tpu.pipeline_mode<synchronous>, transform_indices = @transform_5, window_bounds = array<i64: 32, 32>}, {pipeline_mode = #tpu.pipeline_mode<synchronous>, transform_indices = @transform_6, window_bounds = array<i64: 1, 32>}, {pipeline_mode = #tpu.pipeline_mode<synchronous>, transform_indices = @transform_7, window_bounds = array<i64: 32, 8>}, {pipeline_mode = #tpu.pipeline_mode<synchronous>, transform_indices = @transform_8, window_bounds = array<i64: 1, 8>}, {transform_indices = @transform_9, window_bounds = array<i64: 8, 8>}]} {
    %c0 = arith.constant 0 : index
    %c0_0 = arith.constant 0 : index
    %0 = vector.load %arg1[%c0, %c0_0] : memref<8x16xf32, #tpu.memory_space<vmem>>, vector<8x16xf32>
    %1 = arith.truncf %0 : vector<8x16xf32> to vector<8x16xbf16>
    %c0_1 = arith.constant 0 : index
    %c0_2 = arith.constant 0 : index
    %2 = vector.load %arg2[%c0_1, %c0_2] : memref<16x32xbf16, #tpu.memory_space<vmem>>, vector<16x32xbf16>
    %cst = arith.constant dense<0.000000e+00> : vector<8x32xf32>
    %3 = tpu.matmul %1, %2, %cst {dimension_numbers = #tpu.dot_dimension_numbers<[1], [0], [0], [1], [0, 0, 1, 1], [], []>} : vector<8x16xbf16>, vector<16x32xbf16>, vector<8x32xf32> -> vector<8x32xf32>
    %c0_3 = arith.constant 0 : index
    %c0_4 = arith.constant 0 : index
    %4 = vector.load %arg3[%c0_3, %c0_4] : memref<1x32xf32, #tpu.memory_space<vmem>>, vector<1x32xf32>
    %5 = vector.broadcast %4 : vector<1x32xf32> to vector<8x32xf32>
    %6 = arith.addf %3, %5 : vector<8x32xf32>
    %cst_5 = arith.constant 0.000000e+00 : f32
    %7 = vector.broadcast %cst_5 : f32 to vector<8x32xf32>
    %8 = arith.maximumf %6, %7 : vector<8x32xf32>
    %9 = arith.truncf %8 : vector<8x32xf32> to vector<8x32xbf16>
    %c0_6 = arith.constant 0 : index
    %c0_7 = arith.constant 0 : index
    %10 = vector.load %arg4[%c0_6, %c0_7] : memref<32x32xbf16, #tpu.memory_space<vmem>>, vector<32x32xbf16>
    %cst_8 = arith.constant dense<0.000000e+00> : vector<8x32xf32>
    %11 = tpu.matmul %9, %10, %cst_8 {dimension_numbers = #tpu.dot_dimension_numbers<[1], [0], [0], [1], [0, 0, 1, 1], [], []>} : vector<8x32xbf16>, vector<32x32xbf16>, vector<8x32xf32> -> vector<8x32xf32>
    %c0_9 = arith.constant 0 : index
    %c0_10 = arith.constant 0 : index
    %12 = vector.load %arg5[%c0_9, %c0_10] : memref<1x32xf32, #tpu.memory_space<vmem>>, vector<1x32xf32>
    %13 = vector.broadcast %12 : vector<1x32xf32> to vector<8x32xf32>
    %14 = arith.addf %11, %13 : vector<8x32xf32>
    %cst_11 = arith.constant 5.000000e-01 : f32
    %15 = vector.broadcast %cst_11 : f32 to vector<8x32xf32>
    %16 = arith.mulf %15, %14 : vector<8x32xf32>
    %17 = math.tanh %16 : vector<8x32xf32>
    %cst_12 = arith.constant 5.000000e-01 : f32
    %18 = vector.broadcast %cst_12 : f32 to vector<8x32xf32>
    %19 = arith.mulf %18, %17 : vector<8x32xf32>
    %cst_13 = arith.constant 5.000000e-01 : f32
    %20 = vector.broadcast %cst_13 : f32 to vector<8x32xf32>
    %21 = arith.addf %19, %20 : vector<8x32xf32>
    %22 = arith.truncf %21 : vector<8x32xf32> to vector<8x32xbf16>
    %c0_14 = arith.constant 0 : index
    %c0_15 = arith.constant 0 : index
    %23 = vector.load %arg6[%c0_14, %c0_15] : memref<32x32xbf16, #tpu.memory_space<vmem>>, vector<32x32xbf16>
    %cst_16 = arith.constant dense<0.000000e+00> : vector<8x32xf32>
    %24 = tpu.matmul %22, %23, %cst_16 {dimension_numbers = #tpu.dot_dimension_numbers<[1], [0], [0], [1], [0, 0, 1, 1], [], []>} : vector<8x32xbf16>, vector<32x32xbf16>, vector<8x32xf32> -> vector<8x32xf32>
    %c0_17 = arith.constant 0 : index
    %c0_18 = arith.constant 0 : index
    %25 = vector.load %arg7[%c0_17, %c0_18] : memref<1x32xf32, #tpu.memory_space<vmem>>, vector<1x32xf32>
    %26 = vector.broadcast %25 : vector<1x32xf32> to vector<8x32xf32>
    %27 = arith.addf %24, %26 : vector<8x32xf32>
    %cst_19 = arith.constant 5.000000e-01 : f32
    %28 = vector.broadcast %cst_19 : f32 to vector<8x32xf32>
    %29 = arith.mulf %28, %27 : vector<8x32xf32>
    %30 = math.tanh %29 : vector<8x32xf32>
    %cst_20 = arith.constant 5.000000e-01 : f32
    %31 = vector.broadcast %cst_20 : f32 to vector<8x32xf32>
    %32 = arith.mulf %31, %30 : vector<8x32xf32>
    %cst_21 = arith.constant 5.000000e-01 : f32
    %33 = vector.broadcast %cst_21 : f32 to vector<8x32xf32>
    %34 = arith.addf %32, %33 : vector<8x32xf32>
    %35 = arith.truncf %34 : vector<8x32xf32> to vector<8x32xbf16>
    %c0_22 = arith.constant 0 : index
    %c0_23 = arith.constant 0 : index
    %36 = vector.load %arg8[%c0_22, %c0_23] : memref<32x8xbf16, #tpu.memory_space<vmem>>, vector<32x8xbf16>
    %cst_24 = arith.constant dense<0.000000e+00> : vector<8x8xf32>
    %37 = tpu.matmul %35, %36, %cst_24 {dimension_numbers = #tpu.dot_dimension_numbers<[1], [0], [0], [1], [0, 0, 1, 1], [], []>} : vector<8x32xbf16>, vector<32x8xbf16>, vector<8x8xf32> -> vector<8x8xf32>
    %c0_25 = arith.constant 0 : index
    %c0_26 = arith.constant 0 : index
    %38 = vector.load %arg9[%c0_25, %c0_26] : memref<1x8xf32, #tpu.memory_space<vmem>>, vector<1x8xf32>
    %39 = vector.broadcast %38 : vector<1x8xf32> to vector<8x8xf32>
    %40 = arith.addf %37, %39 : vector<8x8xf32>
    %cst_27 = arith.constant 5.000000e-01 : f32
    %41 = vector.broadcast %cst_27 : f32 to vector<8x8xf32>
    %42 = arith.mulf %41, %40 : vector<8x8xf32>
    %43 = math.tanh %42 : vector<8x8xf32>
    %cst_28 = arith.constant 5.000000e-01 : f32
    %44 = vector.broadcast %cst_28 : f32 to vector<8x8xf32>
    %45 = arith.mulf %44, %43 : vector<8x8xf32>
    %cst_29 = arith.constant 5.000000e-01 : f32
    %46 = vector.broadcast %cst_29 : f32 to vector<8x8xf32>
    %47 = arith.addf %45, %46 : vector<8x8xf32>
    %c0_30 = arith.constant 0 : index
    %c0_31 = arith.constant 0 : index
    %48 = vector.load %arg10[%c0_30, %c0_31] : memref<8x8xf32, #tpu.memory_space<vmem>>, vector<8x8xf32>
    tpu.vector_store %arg10[%c0_30, %c0_31], %47 {strides = array<i32>} : memref<8x8xf32, #tpu.memory_space<vmem>>, vector<8x8xf32>,
    return
  }
  func.func @transform_0(%arg0: i32) -> (i32, i32) {
    %c0_i32 = arith.constant 0 : i32
    %c0_i32_0 = arith.constant 0 : i32
    return %arg0, %c0_i32 : i32, i32
  }
  func.func @transform_1(%arg0: i32) -> (i32, i32) {
    %c0_i32 = arith.constant 0 : i32
    %c0_i32_0 = arith.constant 0 : i32
    %c0_i32_1 = arith.constant 0 : i32
    return %c0_i32, %c0_i32_0 : i32, i32
  }
  func.func @transform_2(%arg0: i32) -> (i32, i32) {
    %c0_i32 = arith.constant 0 : i32
    %c0_i32_0 = arith.constant 0 : i32
    %c0_i32_1 = arith.constant 0 : i32
    return %c0_i32, %c0_i32_0 : i32, i32
  }
  func.func @transform_3(%arg0: i32) -> (i32, i32) {
    %c0_i32 = arith.constant 0 : i32
    %c0_i32_0 = arith.constant 0 : i32
    %c0_i32_1 = arith.constant 0 : i32
    return %c0_i32, %c0_i32_0 : i32, i32
  }
  func.func @transform_4(%arg0: i32) -> (i32, i32) {
    %c0_i32 = arith.constant 0 : i32
    %c0_i32_0 = arith.constant 0 : i32
    %c0_i32_1 = arith.constant 0 : i32
    return %c0_i32, %c0_i32_0 : i32, i32
  }
  func.func @transform_5(%arg0: i32) -> (i32, i32) {
    %c0_i32 = arith.constant 0 : i32
    %c0_i32_0 = arith.constant 0 : i32
    %c0_i32_1 = arith.constant 0 : i32
    return %c0_i32, %c0_i32_0 : i32, i32
  }
  func.func @transform_6(%arg0: i32) -> (i32, i32) {
    %c0_i32 = arith.constant 0 : i32
    %c0_i32_0 = arith.constant 0 : i32
    %c0_i32_1 = arith.constant 0 : i32
    return %c0_i32, %c0_i32_0 : i32, i32
  }
  func.func @transform_7(%arg0: i32) -> (i32, i32) {
    %c0_i32 = arith.constant 0 : i32
    %c0_i32_0 = arith.constant 0 : i32
    %c0_i32_1 = arith.constant 0 : i32
    return %c0_i32, %c0_i32_0 : i32, i32
  }
  func.func @transform_8(%arg0: i32) -> (i32, i32) {
    %c0_i32 = arith.constant 0 : i32
    %c0_i32_0 = arith.constant 0 : i32
    %c0_i32_1 = arith.constant 0 : i32
    return %c0_i32, %c0_i32_0 : i32, i32
  }
  func.func @transform_9(%arg0: i32) -> (i32, i32) {
    %c0_i32 = arith.constant 0 : i32
    %c0_i32_0 = arith.constant 0 : i32
    return %arg0, %c0_i32 : i32, i32
  }
}

</mosaic_0001>

<llo_original>
// kernel: tpu_custom_call.1
$region0: #{tpu_custom_call.1}
  #allocation0 [shape = 'u32[]', space=smem, size = 0x4, offset = 0x4, fixed_abs, tag = 'smem constant byte address 0x4 - core index']
  #allocation1 [shape = 'u32[144,128]{1,0:T(1,128)}', space=vmem, size = 0x12000, scoped, tag = 'internal scratch']
  %s0 = inlined_call_operand.hbm [shape: f32[8,16], index: 0, kind: input, shape index: {}]
  %s1 = inlined_call_operand.hbm [shape: bf16[16,32], index: 1, kind: input, shape index: {}]
  %s2 = inlined_call_operand.vmem [shape: f32[1,32], index: 2, kind: input, shape index: {}]
  %s3 = inlined_call_operand.vmem [shape: bf16[32,32], index: 3, kind: input, shape index: {}]
  %s4 = inlined_call_operand.vmem [shape: f32[1,32], index: 4, kind: input, shape index: {}]
  %s5 = inlined_call_operand.vmem [shape: bf16[32,32], index: 5, kind: input, shape index: {}]
  %s6 = inlined_call_operand.vmem [shape: f32[1,32], index: 6, kind: input, shape index: {}]
  %s7 = inlined_call_operand.vmem [shape: bf16[32,8], index: 7, kind: input, shape index: {}]
  %s8 = inlined_call_operand.vmem [shape: f32[1,8], index: 8, kind: input, shape index: {}]
  %s9 = inlined_call_operand.hbm [shape: f32[8,8], index: 9, kind: output, shape index: {}]
  %s10 = sld [smem:[#allocation0]]
  $region54: #{tpu_custom_call.1} parent=0
    _
  %s12 = ssub.s32 1, %s10
  %s13 = scalar_select 0, %s12, %s10
  $region1: #{tpu_custom_call.1} parent=0
    #allocation2 [shape = 'u8[4096]{0}', space=vmem, size = 0x1000, scoped, tag = 'input window, operand 0, single buffered']
    #allocation3 [shape = 's32[1]{0}', space=sflag, size = 0x4, scoped, tag = 'scoped memory for tpu_custom_call.1']
    #allocation4 [shape = 's32[1]{0}', space=sflag, size = 0x4, scoped, tag = 'scoped memory for tpu_custom_call.1']
    #allocation5 [shape = 'u8[4096]{0}', space=vmem, size = 0x1000, scoped, tag = 'input window, operand 1, single buffered']
    #allocation6 [shape = 's32[1]{0}', space=sflag, size = 0x4, scoped, tag = 'scoped memory for tpu_custom_call.1']
    #allocation7 [shape = 'u8[4096]{0}', space=vmem, size = 0x1000, scoped, tag = 'output window, operand 0, single buffered']
    %14 = vsyncpa [#allocation3], 0
    %15 = vsyncpa [#allocation6], 0
    %16 = vsyncpa [#allocation4], 0
    // Predicated region
    $region2: #{tpu_custom_call.1} parent=1 // pred_check
      _
    $region3: #{tpu_custom_call.1} parent=1 // pred_check_branch
      %18 = sbr.rel (0) target = $region5
    $region4: #{tpu_custom_call.1} parent=1 // pred_region
      %s20 = ssub.s32 128, 128
      %21 = vsyncadd [#allocation3], %s20
      %s23 = sshll.u32 [#allocation2], 4
      %s24 = int_to_ptr.vmem [resolvable:$true] %s23
      %26 = dma.hbm_to_vmem [thread:$0]  %s0, 128, %s24, [#allocation3]
    $region5: #{tpu_custom_call.1} parent=1 // pred_fallthru
      _
    // Predicated region
    $region6: #{tpu_custom_call.1} parent=1 // pred_check
      _
    $region7: #{tpu_custom_call.1} parent=1 // pred_check_branch
      %28 = sbr.rel (0) target = $region9
    $region8: #{tpu_custom_call.1} parent=1 // pred_region
      %s30 = ssub.s32 128, 128
      %31 = vsyncadd [#allocation6], %s30
      %s32 = sshll.u32 [#allocation5], 4
      %s33 = int_to_ptr.vmem [resolvable:$true] %s32
      %38 = dma.hbm_to_vmem [thread:$0]  %s1, 128, %s33, [#allocation6], 64, 64, 4
    $region9: #{tpu_custom_call.1} parent=1 // pred_fallthru
      _
    // Predicated region
    $region10: #{tpu_custom_call.1} parent=1 // pred_check
      _
    $region11: #{tpu_custom_call.1} parent=1 // pred_check_branch
      %40 = sbr.rel (0) target = $region13
    $region12: #{tpu_custom_call.1} parent=1 // pred_region
      _
    $region13: #{tpu_custom_call.1} parent=1 // pred_fallthru
      _
    // Predicated region
    $region14: #{tpu_custom_call.1} parent=1 // pred_check
      _
    $region15: #{tpu_custom_call.1} parent=1 // pred_check_branch
      %42 = sbr.rel (0) target = $region17
    $region16: #{tpu_custom_call.1} parent=1 // pred_region
      _
    $region17: #{tpu_custom_call.1} parent=1 // pred_fallthru
      _
    // Predicated region
    $region18: #{tpu_custom_call.1} parent=1 // pred_check
      _
    $region19: #{tpu_custom_call.1} parent=1 // pred_check_branch
      %44 = sbr.rel (0) target = $region21
    $region20: #{tpu_custom_call.1} parent=1 // pred_region
      _
    $region21: #{tpu_custom_call.1} parent=1 // pred_fallthru
      _
    // Predicated region
    $region22: #{tpu_custom_call.1} parent=1 // pred_check
      _
    $region23: #{tpu_custom_call.1} parent=1 // pred_check_branch
      %46 = sbr.rel (0) target = $region25
    $region24: #{tpu_custom_call.1} parent=1 // pred_region
      _
    $region25: #{tpu_custom_call.1} parent=1 // pred_fallthru
      _
    // Predicated region
    $region26: #{tpu_custom_call.1} parent=1 // pred_check
      _
    $region27: #{tpu_custom_call.1} parent=1 // pred_check_branch
      %48 = sbr.rel (0) target = $region29
    $region28: #{tpu_custom_call.1} parent=1 // pred_region
      _
    $region29: #{tpu_custom_call.1} parent=1 // pred_fallthru
      _
    // Predicated region
    $region30: #{tpu_custom_call.1} parent=1 // pred_check
      _
    $region31: #{tpu_custom_call.1} parent=1 // pred_check_branch
      %50 = sbr.rel (0) target = $region33
    $region32: #{tpu_custom_call.1} parent=1 // pred_region
      _
    $region33: #{tpu_custom_call.1} parent=1 // pred_fallthru
      _
    // Predicated region
    $region34: #{tpu_custom_call.1} parent=1 // pred_check
      _
    $region35: #{tpu_custom_call.1} parent=1 // pred_check_branch
      %52 = sbr.rel (0) target = $region37
    $region36: #{tpu_custom_call.1} parent=1 // pred_region
      _
    $region37: #{tpu_custom_call.1} parent=1 // pred_fallthru
      _
    // Predicated region
    $region38: #{tpu_custom_call.1} parent=1 // pred_check
      _
    $region39: #{tpu_custom_call.1} parent=1 // pred_check_branch
      %54 = sbr.rel (0) target = $region41
    $region40: #{tpu_custom_call.1} parent=1 // pred_region
      %55 = dma.done [#allocation3], 128
    $region41: #{tpu_custom_call.1} parent=1 // pred_fallthru
      _
    // Predicated region
    $region42: #{tpu_custom_call.1} parent=1 // pred_check
      _
    $region43: #{tpu_custom_call.1} parent=1 // pred_check_branch
      %57 = sbr.rel (0) target = $region45
    $region44: #{tpu_custom_call.1} parent=1 // pred_region
      %58 = dma.done [#allocation6], 128
    $region45: #{tpu_custom_call.1} parent=1 // pred_fallthru
      _
    %v60 = vld [vmem:[#allocation2] sm:$0xff]
    %v61 = vpack.c.bf16 %v60, %v60
    %v62 = vld [vmem:[#allocation5] sm:$0xf]
    %v63 = vld [vmem:[#allocation5 + $0x4] sm:$0xf]
    %v64 = vld [vmem:[%s2] sm:$0x1]
    %v66 = vlaneseq
    %v67 = vshrl.u32 %v66, 7
    %v68 = vsub.s32 0, %v67
    %v69 = vrot.slane %v64, %v68
    %v73 = vunpack.c.l.b16 %v62
    %v74 = vunpack.c.l.b16 %v63
    %v75 = vpack.c.b16 %v74, %v73
    %vm77 = vcmask 130048
    %v79 = vsel %vm77, %v61, 0
    %81 = vmatprep.subr.bf16.mxu0 0
    %82 = vmatpush1.bf16.msra.mxu0 %v75
    %83 = vmatprep.subr.bf16.mxu0 0
    %84 = vmatpush1.bf16.msra.mxu0 0
    %85 = vmatprep.subr.bf16.mxu0 0
    %86 = vmatpush1.bf16.msra.mxu0 0
    %87 = vmatprep.subr.bf16.mxu0 0
    %88 = vmatpush1.bf16.msra.mxu0 0
    %89 = vmatprep.subr.bf16.mxu0 0
    %90 = vmatpush1.bf16.msra.mxu0 0
    %91 = vmatprep.subr.bf16.mxu0 0
    %92 = vmatpush1.bf16.msra.mxu0 0
    %93 = vmatprep.subr.bf16.mxu0 0
    %94 = vmatpush1.bf16.msra.mxu0 0
    %95 = vmatprep.subr.bf16.mxu0 0
    %96 = vmatpush1.bf16.msra.mxu0 0
    %97 = vmatprep.subr.bf16.mxu0 0
    %98 = vmatpush1.bf16.msra.mxu0 0
    %99 = vmatprep.subr.bf16.mxu0 0
    %100 = vmatpush1.bf16.msra.mxu0 0
    %101 = vmatprep.subr.bf16.mxu0 0
    %102 = vmatpush1.bf16.msra.mxu0 0
    %103 = vmatprep.subr.bf16.mxu0 0
    %104 = vmatpush1.bf16.msra.mxu0 0
    %105 = vmatprep.subr.bf16.mxu0 0
    %106 = vmatpush1.bf16.msra.mxu0 0
    %107 = vmatprep.subr.bf16.mxu0 0
    %108 = vmatpush1.bf16.msra.mxu0 0
    %109 = vmatprep.subr.bf16.mxu0 0
    %110 = vmatpush1.bf16.msra.mxu0 0
    %111 = vmatprep.subr.bf16.mxu0 0
    %112 = vmatpush1.bf16.msra.mxu0 0
    %113 = vmatprep.mubr.bf16.mxu0 0
    %114 = vmatmul.mubr.bf16.gmra.mrb[0].mxu0 %v79
    %v115 = vpop.f32.mrb[0].mxu0
    %v116 = vadd.f32 %v69, %v115
    %v117 = vpop.f32.mrb[0].mxu0
    %v118 = vpop.f32.mrb[0].mxu0
    %v119 = vpop.f32.mrb[0].mxu0
    %120 = vdwg.mxu0
    %v121 = vmax.f32 %v116, 0.0
    %v122 = vpack.c.bf16 %v121, %v121
    %v123 = vld [vmem:[%s3] sm:$0xf]
    %v124 = vld [vmem:[%s3 + $0x4] sm:$0xf]
    %v125 = vld [vmem:[%s3 + $0x8] sm:$0xf]
    %v126 = vld [vmem:[%s3 + $0xc] sm:$0xf]
    %v127 = vld [vmem:[%s4] sm:$0x1]
    %v129 = vlaneseq
    %v130 = vshrl.u32 %v129, 7
    %v131 = vsub.s32 0, %v130
    %v132 = vrot.slane %v127, %v131
    %v138 = vunpack.c.l.b16 %v123
    %v139 = vunpack.c.l.b16 %v124
    %v140 = vunpack.c.l.b16 %v125
    %v141 = vunpack.c.l.b16 %v126
    %v142 = vpack.c.b16 %v139, %v138
    %v143 = vpack.c.b16 %v141, %v140
    %vm146 = vcmask 261120
    %v148 = vsel %vm146, %v122, 0
    %150 = vmatprep.subr.bf16.mxu0 0
    %151 = vmatpush1.bf16.msra.mxu0 %v142
    %152 = vmatprep.subr.bf16.mxu0 0
    %153 = vmatpush1.bf16.msra.mxu0 %v143
    %154 = vmatprep.subr.bf16.mxu0 0
    %155 = vmatpush1.bf16.msra.mxu0 0
    %156 = vmatprep.subr.bf16.mxu0 0
    %157 = vmatpush1.bf16.msra.mxu0 0
    %158 = vmatprep.subr.bf16.mxu0 0
    %159 = vmatpush1.bf16.msra.mxu0 0
    %160 = vmatprep.subr.bf16.mxu0 0
    %161 = vmatpush1.bf16.msra.mxu0 0
    %162 = vmatprep.subr.bf16.mxu0 0
    %163 = vmatpush1.bf16.msra.mxu0 0
    %164 = vmatprep.subr.bf16.mxu0 0
    %165 = vmatpush1.bf16.msra.mxu0 0
    %166 = vmatprep.subr.bf16.mxu0 0
    %167 = vmatpush1.bf16.msra.mxu0 0
    %168 = vmatprep.subr.bf16.mxu0 0
    %169 = vmatpush1.bf16.msra.mxu0 0
    %170 = vmatprep.subr.bf16.mxu0 0
    %171 = vmatpush1.bf16.msra.mxu0 0
    %172 = vmatprep.subr.bf16.mxu0 0
    %173 = vmatpush1.bf16.msra.mxu0 0
    %174 = vmatprep.subr.bf16.mxu0 0
    %175 = vmatpush1.bf16.msra.mxu0 0
    %176 = vmatprep.subr.bf16.mxu0 0
    %177 = vmatpush1.bf16.msra.mxu0 0
    %178 = vmatprep.subr.bf16.mxu0 0
    %179 = vmatpush1.bf16.msra.mxu0 0
    %180 = vmatprep.subr.bf16.mxu0 0
    %181 = vmatpush1.bf16.msra.mxu0 0
    %182 = vmatprep.mubr.bf16.mxu0 0
    %183 = vmatmul.mubr.bf16.gmra.mrb[0].mxu0 %v148
    %v184 = vpop.f32.mrb[0].mxu0
    %v185 = vadd.f32 %v132, %v184
    %v186 = vpop.f32.mrb[0].mxu0
    %v187 = vpop.f32.mrb[0].mxu0
    %v188 = vpop.f32.mrb[0].mxu0
    %189 = vdwg.mxu0
    %v190 = vmul.f32 %v185, 0.5
    %v191 = vtanh.pop %v190
    %v192 = vmul.f32 %v191, 0.5
    %v193 = vadd.f32 %v192, 0.5
    %v194 = vpack.c.bf16 %v193, %v193
    %v195 = vld [vmem:[%s5] sm:$0xf]
    %v196 = vld [vmem:[%s5 + $0x4] sm:$0xf]
    %v197 = vld [vmem:[%s5 + $0x8] sm:$0xf]
    %v198 = vld [vmem:[%s5 + $0xc] sm:$0xf]
    %v199 = vld [vmem:[%s6] sm:$0x1]
    %v201 = vlaneseq
    %v202 = vshrl.u32 %v201, 7
    %v203 = vsub.s32 0, %v202
    %v204 = vrot.slane %v199, %v203
    %v210 = vunpack.c.l.b16 %v195
    %v211 = vunpack.c.l.b16 %v196
    %v212 = vunpack.c.l.b16 %v197
    %v213 = vunpack.c.l.b16 %v198
    %v214 = vpack.c.b16 %v211, %v210
    %v215 = vpack.c.b16 %v213, %v212
    %v219 = vsel %vm146, %v194, 0
    %221 = vmatprep.subr.bf16.mxu0 0
    %222 = vmatpush1.bf16.msra.mxu0 %v214
    %223 = vmatprep.subr.bf16.mxu0 0
    %224 = vmatpush1.bf16.msra.mxu0 %v215
    %225 = vmatprep.subr.bf16.mxu0 0
    %226 = vmatpush1.bf16.msra.mxu0 0
    %227 = vmatprep.subr.bf16.mxu0 0
    %228 = vmatpush1.bf16.msra.mxu0 0
    %229 = vmatprep.subr.bf16.mxu0 0
    %230 = vmatpush1.bf16.msra.mxu0 0
    %231 = vmatprep.subr.bf16.mxu0 0
    %232 = vmatpush1.bf16.msra.mxu0 0
    %233 = vmatprep.subr.bf16.mxu0 0
    %234 = vmatpush1.bf16.msra.mxu0 0
    %235 = vmatprep.subr.bf16.mxu0 0
    %236 = vmatpush1.bf16.msra.mxu0 0
    %237 = vmatprep.subr.bf16.mxu0 0
    %238 = vmatpush1.bf16.msra.mxu0 0
    %239 = vmatprep.subr.bf16.mxu0 0
    %240 = vmatpush1.bf16.msra.mxu0 0
    %241 = vmatprep.subr.bf16.mxu0 0
    %242 = vmatpush1.bf16.msra.mxu0 0
    %243 = vmatprep.subr.bf16.mxu0 0
    %244 = vmatpush1.bf16.msra.mxu0 0
    %245 = vmatprep.subr.bf16.mxu0 0
    %246 = vmatpush1.bf16.msra.mxu0 0
    %247 = vmatprep.subr.bf16.mxu0 0
    %248 = vmatpush1.bf16.msra.mxu0 0
    %249 = vmatprep.subr.bf16.mxu0 0
    %250 = vmatpush1.bf16.msra.mxu0 0
    %251 = vmatprep.subr.bf16.mxu0 0
    %252 = vmatpush1.bf16.msra.mxu0 0
    %253 = vmatprep.mubr.bf16.mxu0 0
    %254 = vmatmul.mubr.bf16.gmra.mrb[0].mxu0 %v219
    %v255 = vpop.f32.mrb[0].mxu0
    %v256 = vadd.f32 %v204, %v255
    %v257 = vpop.f32.mrb[0].mxu0
    %v258 = vpop.f32.mrb[0].mxu0
    %v259 = vpop.f32.mrb[0].mxu0
    %260 = vdwg.mxu0
    %v261 = vmul.f32 %v256, 0.5
    %v262 = vtanh.pop %v261
    %v263 = vmul.f32 %v262, 0.5
    %v264 = vadd.f32 %v263, 0.5
    %v265 = vpack.c.bf16 %v264, %v264
    %v266 = vld [vmem:[%s7] sm:$0xf]
    %v267 = vld [vmem:[%s7 + $0x4] sm:$0xf]
    %v268 = vld [vmem:[%s7 + $0x8] sm:$0xf]
    %v269 = vld [vmem:[%s7 + $0xc] sm:$0xf]
    %v270 = vld [vmem:[%s8] sm:$0x1]
    %v272 = vlaneseq
    %v273 = vshrl.u32 %v272, 7
    %v274 = vsub.s32 0, %v273
    %v275 = vrot.slane %v270, %v274
    %v281 = vunpack.c.l.b16 %v266
    %v282 = vunpack.c.l.b16 %v267
    %v283 = vunpack.c.l.b16 %v268
    %v284 = vunpack.c.l.b16 %v269
    %v285 = vpack.c.b16 %v282, %v281
    %v286 = vpack.c.b16 %v284, %v283
    %v290 = vsel %vm146, %v265, 0
    %292 = vmatprep.subr.bf16.mxu0 0
    %293 = vmatpush1.bf16.msra.mxu0 %v285
    %294 = vmatprep.subr.bf16.mxu0 0
    %295 = vmatpush1.bf16.msra.mxu0 %v286
    %296 = vmatprep.subr.bf16.mxu0 0
    %297 = vmatpush1.bf16.msra.mxu0 0
    %298 = vmatprep.subr.bf16.mxu0 0
    %299 = vmatpush1.bf16.msra.mxu0 0
    %300 = vmatprep.subr.bf16.mxu0 0
    %301 = vmatpush1.bf16.msra.mxu0 0
    %302 = vmatprep.subr.bf16.mxu0 0
    %303 = vmatpush1.bf16.msra.mxu0 0
    %304 = vmatprep.subr.bf16.mxu0 0
    %305 = vmatpush1.bf16.msra.mxu0 0
    %306 = vmatprep.subr.bf16.mxu0 0
    %307 = vmatpush1.bf16.msra.mxu0 0
    %308 = vmatprep.subr.bf16.mxu0 0
    %309 = vmatpush1.bf16.msra.mxu0 0
    %310 = vmatprep.subr.bf16.mxu0 0
    %311 = vmatpush1.bf16.msra.mxu0 0
    %312 = vmatprep.subr.bf16.mxu0 0
    %313 = vmatpush1.bf16.msra.mxu0 0
    %314 = vmatprep.subr.bf16.mxu0 0
    %315 = vmatpush1.bf16.msra.mxu0 0
    %316 = vmatprep.subr.bf16.mxu0 0
    %317 = vmatpush1.bf16.msra.mxu0 0
    %318 = vmatprep.subr.bf16.mxu0 0
    %319 = vmatpush1.bf16.msra.mxu0 0
    %320 = vmatprep.subr.bf16.mxu0 0
    %321 = vmatpush1.bf16.msra.mxu0 0
    %322 = vmatprep.subr.bf16.mxu0 0
    %323 = vmatpush1.bf16.msra.mxu0 0
    %324 = vmatprep.mubr.bf16.mxu0 0
    %325 = vmatmul.mubr.bf16.gmra.mrb[0].mxu0 %v290
    %v326 = vpop.f32.mrb[0].mxu0
    %v327 = vadd.f32 %v275, %v326
    %v328 = vpop.f32.mrb[0].mxu0
    %v329 = vpop.f32.mrb[0].mxu0
    %v330 = vpop.f32.mrb[0].mxu0
    %331 = vdwg.mxu0
    %v332 = vmul.f32 %v327, 0.5
    %v333 = vtanh.pop %v332
    %v334 = vmul.f32 %v333, 0.5
    %v335 = vadd.f32 %v334, 0.5
    %vm336 = vcmask 64512
    %337 = vst.msk [vmem:[#allocation7] sm:$0xff] %vm336, %v335
    // Predicated region
    $region46: #{tpu_custom_call.1} parent=1 // pred_check
      _
    $region47: #{tpu_custom_call.1} parent=1 // pred_check_branch
      %339 = sbr.rel (0) target = $region49
    $region48: #{tpu_custom_call.1} parent=1 // pred_region
      %s341 = ssub.s32 128, 128
      %342 = vsyncadd [#allocation4], %s341
      %s344 = sshll.u32 [#allocation7], 4
      %s345 = int_to_ptr.vmem [resolvable:$true] %s344
      %347 = dma.vmem_to_hbm [thread:$0]  %s345, 128, %s9, [#allocation4]
    $region49: #{tpu_custom_call.1} parent=1 // pred_fallthru
      _
    // Predicated region
    $region50: #{tpu_custom_call.1} parent=1 // pred_check
      _
    $region51: #{tpu_custom_call.1} parent=1 // pred_check_branch
      %349 = sbr.rel (0) target = $region53
    $region52: #{tpu_custom_call.1} parent=1 // pred_region
      %350 = dma.done [#allocation4], 128
    $region53: #{tpu_custom_call.1} parent=1 // pred_fallthru
      _
    %351 = vsyncpa [#allocation3], 1
    %352 = vsyncpa [#allocation6], 1
    %353 = vsyncpa [#allocation4], 1

</llo_original>
